<compile_context>
chip_gen: v6e
topology: v6e:2x2x1
jax: 0.10.0
libtpu: 0.0.40
codegen_flags: <defaults>
</compile_context>

<pallas_src>
import functools

import jax
import jax.numpy as jnp
from jax.experimental import pallas as pl
from jax.experimental.pallas import tpu as pltpu


def _round_up(n, m):
    return ((n + m - 1) // m) * m


def _critic_kernel(x_ref,           # (8, TB)   features x batch-tile (batch on lanes)
                   w1_ref, b1_ref,  # (32, 8),  (32, 1)
                   w2_ref, b2_ref,  # (32, 32), (32, 1)
                   w3_ref, b3_ref,  # (32, 32), (32, 1)
                   w4_ref,          # (32, 1)   value-head weights as a column
                   b4_ref,          # (1, 1)    scalar bias in SMEM
                   o_ref,           # (1, TB)   lane-dense output row
                   *, use_bf16):
    x = x_ref[...]
    if use_bf16:
        # Weights were pre-cast to bf16 in the wrapper; only the (8, TB) x cast
        # happens per tile (cheap).  Accumulation / elementwise stays f32.
        x = x.astype(jnp.bfloat16)

    # layer 1: (32, 8) @ (8, TB) -> (32, TB); bias + ReLU in f32 on the VPU.
    h = jnp.dot(w1_ref[...], x, preferred_element_type=jnp.float32)
    h = jnp.maximum(h + b1_ref[...], 0.0)

    # layer 2: (32, 32) @ (32, TB)
    h = jnp.dot(w2_ref[...], h.astype(jnp.bfloat16) if use_bf16 else h,
                preferred_element_type=jnp.float32)
    h = jnp.maximum(h + b2_ref[...], 0.0)

    # layer 3: (32, 32) @ (32, TB)
    h = jnp.dot(w3_ref[...], h.astype(jnp.bfloat16) if use_bf16 else h,
                preferred_element_type=jnp.float32)
    h = jnp.maximum(h + b3_ref[...], 0.0)

    # layer 4 (value head, out_features = 1): avoid an N=1 MXU matmul.
    # Broadcast-multiply on the VPU and reduce over the 32 feature sublanes on
    # the XLU (otherwise idle) -> (1, TB), stored lane-dense.
    v = jnp.sum(h * w4_ref[...], axis=0, keepdims=True)
    o_ref[...] = (v + b4_ref[0, 0]).astype(o_ref.dtype)


def critic_forward(x, params, *, block_b=8192, use_bf16=False):
    """x: (B, 8) float32 (PyTorch convention).  Returns (B, 1) float32."""
    B, F = x.shape
    assert F == 8, F

    # ---- batch tile selection -------------------------------------------
    # * keep tiles big (default 8192) to amortize the ~600-cycle grid-step
    #   overhead at production batch sizes,
    # * cap at 32768 to respect v7x's 64 MiB VMEM (f32 activation temps),
    # * shrink so there are >= 2 tiles when B allows, so both v7x TensorCores
    #   get work under dimension_semantics=("parallel",).
    block_b = max(128, min(block_b, 32768))
    assert block_b % 128 == 0, "batch tile must be lane-aligned (multiple of 128)"
    eff_block = min(block_b, max(128, _round_up(pl.cdiv(B, 2), 128)))
    num_tiles = pl.cdiv(B, eff_block)

    # Layout plumbing (done once in XLA): present the batch along lanes.
    # Reading (TB, 8) blocks of the row-major x instead would lane-pad the
    # VMEM x buffer 16x (minor dim 8 of 128 lanes) and produce 32-byte DMA
    # segments, so the single wrapper transpose is the cheaper option here.
    x_t = x.T  # (8, B)

    w1, w2, w3 = params["w1"], params["w2"], params["w3"]
    if use_bf16:
        # Pre-cast once here instead of on every grid step inside the kernel.
        w1, w2, w3 = (w.astype(jnp.bfloat16) for w in (w1, w2, w3))

    kernel = functools.partial(_critic_kernel, use_bf16=use_bf16)

    # Weights / biases: full-array blocks with constant index_maps -> fetched
    # once, resident in VMEM for all batch tiles.
    def resident(shape):
        return pl.BlockSpec(shape, lambda i: (0, 0))

    # Advisory cost hint for XLA's scheduler around the custom call.
    flops = 2 * B * (8 * 32 + 32 * 32 + 32 * 32 + 32)
    bytes_accessed = (int(x.size) * x.dtype.itemsize + B * 4
                      + sum(int(p.size) * 4 for p in params.values()))
    cost = pl.CostEstimate(flops=flops, transcendentals=0,
                           bytes_accessed=bytes_accessed)

    out = pl.pallas_call(
        kernel,
        out_shape=jax.ShapeDtypeStruct((1, B), jnp.float32),
        grid=(num_tiles,),
        in_specs=[
            pl.BlockSpec((8, eff_block), lambda i: (0, i)),      # x_t batch tile
            resident((32, 8)),    # w1
            resident((32, 1)),    # b1
            resident((32, 32)),   # w2
            resident((32, 1)),    # b2
            resident((32, 32)),   # w3
            resident((32, 1)),    # b3
            resident((32, 1)),    # w4 (column)
            pl.BlockSpec(memory_space=pltpu.MemorySpace.SMEM),   # b4 scalar
        ],
        out_specs=pl.BlockSpec((1, eff_block), lambda i: (0, i)),
        compiler_params=pltpu.CompilerParams(
            dimension_semantics=("parallel",)),
        cost_estimate=cost,
    )(x_t,
      w1, params["b1"],
      w2, params["b2"],
      w3, params["b3"],
      params["w4"], params["b4"])

    # (1, B) lane-dense slab -> (B, 1) PyTorch-shaped output (pure reshape,
    # no data movement).  Edge-block lanes beyond B were never written.
    return out.reshape(B, 1)


def init_params(key):
    """PyTorch nn.Linear default init: U(-1/sqrt(fan_in), +1/sqrt(fan_in)).

    Weights stored (out_features, in_features) like PyTorch; biases as
    (out_features, 1) columns.  w4 is stored as a (32, 1) column to feed the
    in-kernel value-head reduction; b4 is a (1, 1) scalar (lives in SMEM).
    """
    dims = [(8, 32), (32, 32), (32, 32), (32, 1)]
    params = {}
    for i, (fan_in, fan_out) in enumerate(dims, start=1):
        key, kw, kb = jax.random.split(key, 3)
        bound = 1.0 / jnp.sqrt(float(fan_in))
        w = jax.random.uniform(kw, (fan_out, fan_in), jnp.float32, -bound, bound)
        b = jax.random.uniform(kb, (fan_out, 1), jnp.float32, -bound, bound)
        if i == 4:
            w = w.T  # (1, 32) -> (32, 1) column
        params[f"w{i}"] = w
        params[f"b{i}"] = b
    return params


def critic_forward_ref(x, p):
    """Pure-JAX reference (batch-major) for correctness checking."""
    h = jnp.maximum(x @ p["w1"].T + p["b1"].T, 0.0)
    h = jnp.maximum(h @ p["w2"].T + p["b2"].T, 0.0)
    h = jnp.maximum(h @ p["w3"].T + p["b3"].T, 0.0)
    return jnp.sum(h * p["w4"].T, axis=-1, keepdims=True) + p["b4"]


if __name__ == "__main__":
    key = jax.random.PRNGKey(0)
    key, kx = jax.random.split(key)
    params = init_params(key)

    # Small correctness run.  B is deliberately not a multiple of 128 so the
    # edge-block masking path is exercised, and the wrapper's >=2-tiles logic
    # gives a multi-tile (grid > 1) run even at this size.  Production callers
    # keep the default block_b=8192 (or larger, <= 32768).
    B = 500
    x = jax.random.normal(kx, (B, 8), jnp.float32)

    out = jax.block_until_ready(critic_forward(x, params))
    ref = critic_forward_ref(x, params)

    assert out.shape == (B, 1), out.shape
    assert jnp.allclose(out, ref, atol=1e-5, rtol=1e-5), (
        float(jnp.max(jnp.abs(out - ref))))
    print("KERNEL_OK")
</pallas_src>

<mosaic_0001>
module attributes {stable_mosaic.version = 11 : i64} {
  func.func @_critic_kernel(%arg0: i32, %arg1: memref<8x256xf32, #tpu.memory_space<vmem>>, %arg2: memref<32x8xf32, #tpu.memory_space<vmem>>, %arg3: memref<32x1xf32, #tpu.memory_space<vmem>>, %arg4: memref<32x32xf32, #tpu.memory_space<vmem>>, %arg5: memref<32x1xf32, #tpu.memory_space<vmem>>, %arg6: memref<32x32xf32, #tpu.memory_space<vmem>>, %arg7: memref<32x1xf32, #tpu.memory_space<vmem>>, %arg8: memref<32x1xf32, #tpu.memory_space<vmem>>, %arg9: memref<1x1xf32, #tpu.memory_space<smem>>, %arg10: memref<1x256xf32, #tpu.memory_space<vmem>>) attributes {dimension_semantics = [#tpu.dimension_semantics<parallel>], iteration_bounds = array<i64: 2>, scalar_prefetch = 0 : i64, scratch_operands = 0 : i64, tpu.core_type = #tpu.core_type<tc>, window_params = [{transform_indices = @transform_0, window_bounds = array<i64: 8, 256>}, {pipeline_mode = #tpu.pipeline_mode<synchronous>, transform_indices = @transform_1, window_bounds = array<i64: 32, 8>}, {pipeline_mode = #tpu.pipeline_mode<synchronous>, transform_indices = @transform_2, window_bounds = array<i64: 32, 1>}, {pipeline_mode = #tpu.pipeline_mode<synchronous>, transform_indices = @transform_3, window_bounds = array<i64: 32, 32>}, {pipeline_mode = #tpu.pipeline_mode<synchronous>, transform_indices = @transform_4, window_bounds = array<i64: 32, 1>}, {pipeline_mode = #tpu.pipeline_mode<synchronous>, transform_indices = @transform_5, window_bounds = array<i64: 32, 32>}, {pipeline_mode = #tpu.pipeline_mode<synchronous>, transform_indices = @transform_6, window_bounds = array<i64: 32, 1>}, {pipeline_mode = #tpu.pipeline_mode<synchronous>, transform_indices = @transform_7, window_bounds = array<i64: 32, 1>}, {transform_indices = @transform_8, window_bounds = array<i64: 1, 1>}, {transform_indices = @transform_9, window_bounds = array<i64: 1, 256>}]} {
    %c0 = arith.constant 0 : index
    %c0_0 = arith.constant 0 : index
    %0 = vector.load %arg1[%c0, %c0_0] : memref<8x256xf32, #tpu.memory_space<vmem>>, vector<8x256xf32>
    %c0_1 = arith.constant 0 : index
    %c0_2 = arith.constant 0 : index
    %1 = vector.load %arg2[%c0_1, %c0_2] : memref<32x8xf32, #tpu.memory_space<vmem>>, vector<32x8xf32>
    %cst = arith.constant dense<0.000000e+00> : vector<32x256xf32>
    %2 = tpu.matmul %1, %0, %cst {dimension_numbers = #tpu.dot_dimension_numbers<[1], [0], [0], [1], [0, 0, 1, 1], [], []>} : vector<32x8xf32>, vector<8x256xf32>, vector<32x256xf32> -> vector<32x256xf32>
    %c0_3 = arith.constant 0 : index
    %c0_4 = arith.constant 0 : index
    %3 = vector.load %arg3[%c0_3, %c0_4] : memref<32x1xf32, #tpu.memory_space<vmem>>, vector<32x1xf32>
    %4 = vector.broadcast %3 : vector<32x1xf32> to vector<32x256xf32>
    %5 = arith.addf %2, %4 : vector<32x256xf32>
    %cst_5 = arith.constant 0.000000e+00 : f32
    %6 = vector.broadcast %cst_5 : f32 to vector<32x256xf32>
    %7 = arith.maximumf %5, %6 : vector<32x256xf32>
    %c0_6 = arith.constant 0 : index
    %c0_7 = arith.constant 0 : index
    %8 = vector.load %arg4[%c0_6, %c0_7] : memref<32x32xf32, #tpu.memory_space<vmem>>, vector<32x32xf32>
    %cst_8 = arith.constant dense<0.000000e+00> : vector<32x256xf32>
    %9 = tpu.matmul %8, %7, %cst_8 {dimension_numbers = #tpu.dot_dimension_numbers<[1], [0], [0], [1], [0, 0, 1, 1], [], []>} : vector<32x32xf32>, vector<32x256xf32>, vector<32x256xf32> -> vector<32x256xf32>
    %c0_9 = arith.constant 0 : index
    %c0_10 = arith.constant 0 : index
    %10 = vector.load %arg5[%c0_9, %c0_10] : memref<32x1xf32, #tpu.memory_space<vmem>>, vector<32x1xf32>
    %11 = vector.broadcast %10 : vector<32x1xf32> to vector<32x256xf32>
    %12 = arith.addf %9, %11 : vector<32x256xf32>
    %cst_11 = arith.constant 0.000000e+00 : f32
    %13 = vector.broadcast %cst_11 : f32 to vector<32x256xf32>
    %14 = arith.maximumf %12, %13 : vector<32x256xf32>
    %c0_12 = arith.constant 0 : index
    %c0_13 = arith.constant 0 : index
    %15 = vector.load %arg6[%c0_12, %c0_13] : memref<32x32xf32, #tpu.memory_space<vmem>>, vector<32x32xf32>
    %cst_14 = arith.constant dense<0.000000e+00> : vector<32x256xf32>
    %16 = tpu.matmul %15, %14, %cst_14 {dimension_numbers = #tpu.dot_dimension_numbers<[1], [0], [0], [1], [0, 0, 1, 1], [], []>} : vector<32x32xf32>, vector<32x256xf32>, vector<32x256xf32> -> vector<32x256xf32>
    %c0_15 = arith.constant 0 : index
    %c0_16 = arith.constant 0 : index
    %17 = vector.load %arg7[%c0_15, %c0_16] : memref<32x1xf32, #tpu.memory_space<vmem>>, vector<32x1xf32>
    %18 = vector.broadcast %17 : vector<32x1xf32> to vector<32x256xf32>
    %19 = arith.addf %16, %18 : vector<32x256xf32>
    %cst_17 = arith.constant 0.000000e+00 : f32
    %20 = vector.broadcast %cst_17 : f32 to vector<32x256xf32>
    %21 = arith.maximumf %19, %20 : vector<32x256xf32>
    %c0_18 = arith.constant 0 : index
    %c0_19 = arith.constant 0 : index
    %22 = vector.load %arg8[%c0_18, %c0_19] : memref<32x1xf32, #tpu.memory_space<vmem>>, vector<32x1xf32>
    %23 = vector.broadcast %22 : vector<32x1xf32> to vector<32x256xf32>
    %24 = arith.mulf %21, %23 : vector<32x256xf32>
    %cst_20 = arith.constant dense<0.000000e+00> : vector<256xf32>
    %25 = vector.multi_reduction <add>, %24, %cst_20 [0] : vector<32x256xf32> to vector<256xf32>
    %26 = vector.shape_cast %25 : vector<256xf32> to vector<1x256xf32>
    %c0_21 = arith.constant 0 : index
    %c0_22 = arith.constant 0 : index
    %27 = memref.load %arg9[%c0_21, %c0_22] : memref<1x1xf32, #tpu.memory_space<smem>>
    %28 = vector.broadcast %27 : f32 to vector<1x256xf32>
    %29 = arith.addf %26, %28 : vector<1x256xf32>
    %c0_23 = arith.constant 0 : index
    %c0_24 = arith.constant 0 : index
    %30 = vector.load %arg10[%c0_23, %c0_24] : memref<1x256xf32, #tpu.memory_space<vmem>>, vector<1x256xf32>
    tpu.vector_store %arg10[%c0_23, %c0_24], %29 {strides = array<i32>} : memref<1x256xf32, #tpu.memory_space<vmem>>, vector<1x256xf32>,
    return
  }
  func.func @transform_0(%arg0: i32) -> (i32, i32) {
    %c0_i32 = arith.constant 0 : i32
    %c0_i32_0 = arith.constant 0 : i32
    return %c0_i32, %arg0 : i32, i32
  }
  func.func @transform_1(%arg0: i32) -> (i32, i32) {
    %c0_i32 = arith.constant 0 : i32
    %c0_i32_0 = arith.constant 0 : i32
    %c0_i32_1 = arith.constant 0 : i32
    return %c0_i32, %c0_i32_0 : i32, i32
  }
  func.func @transform_2(%arg0: i32) -> (i32, i32) {
    %c0_i32 = arith.constant 0 : i32
    %c0_i32_0 = arith.constant 0 : i32
    %c0_i32_1 = arith.constant 0 : i32
    return %c0_i32, %c0_i32_0 : i32, i32
  }
  func.func @transform_3(%arg0: i32) -> (i32, i32) {
    %c0_i32 = arith.constant 0 : i32
    %c0_i32_0 = arith.constant 0 : i32
    %c0_i32_1 = arith.constant 0 : i32
    return %c0_i32, %c0_i32_0 : i32, i32
  }
  func.func @transform_4(%arg0: i32) -> (i32, i32) {
    %c0_i32 = arith.constant 0 : i32
    %c0_i32_0 = arith.constant 0 : i32
    %c0_i32_1 = arith.constant 0 : i32
    return %c0_i32, %c0_i32_0 : i32, i32
  }
  func.func @transform_5(%arg0: i32) -> (i32, i32) {
    %c0_i32 = arith.constant 0 : i32
    %c0_i32_0 = arith.constant 0 : i32
    %c0_i32_1 = arith.constant 0 : i32
    return %c0_i32, %c0_i32_0 : i32, i32
  }
  func.func @transform_6(%arg0: i32) -> (i32, i32) {
    %c0_i32 = arith.constant 0 : i32
    %c0_i32_0 = arith.constant 0 : i32
    %c0_i32_1 = arith.constant 0 : i32
    return %c0_i32, %c0_i32_0 : i32, i32
  }
  func.func @transform_7(%arg0: i32) -> (i32, i32) {
    %c0_i32 = arith.constant 0 : i32
    %c0_i32_0 = arith.constant 0 : i32
    %c0_i32_1 = arith.constant 0 : i32
    return %c0_i32, %c0_i32_0 : i32, i32
  }
  func.func @transform_8(%arg0: i32) -> (i32, i32) {
    %c0_i32 = arith.constant 0 : i32
    %c0_i32_0 = arith.constant 0 : i32
    %c0_i32_1 = arith.constant 0 : i32
    return %c0_i32, %c0_i32_0 : i32, i32
  }
  func.func @transform_9(%arg0: i32) -> (i32, i32) {
    %c0_i32 = arith.constant 0 : i32
    %c0_i32_0 = arith.constant 0 : i32
    return %c0_i32, %arg0 : i32, i32
  }
}

</mosaic_0001>

<llo_original>
// kernel: tpu_custom_call.1
$region0: #{tpu_custom_call.1}
  #allocation0 [shape = 'u32[]', space=smem, size = 0x4, offset = 0x4, fixed_abs, tag = 'smem constant byte address 0x4 - core index']
  #allocation1 [shape = 'u32[144,128]{1,0:T(1,128)}', space=vmem, size = 0x12000, scoped, tag = 'internal scratch']
  #allocation2 [shape = 'f32[1,1]{1,0:T(1,128)S(6)}', space=smem, size = 0x200, scoped, tag = 'scoped memory for tpu_custom_call.1']
  %s0 = inlined_call_operand.vmem [shape: f32[8,500], index: 0, kind: input, shape index: {}]
  %s1 = inlined_call_operand.vmem [shape: f32[32,8], index: 1, kind: input, shape index: {}]
  %s2 = inlined_call_operand.vmem [shape: f32[32,1], index: 2, kind: input, shape index: {}]
  %s3 = inlined_call_operand.vmem [shape: f32[32,32], index: 3, kind: input, shape index: {}]
  %s4 = inlined_call_operand.vmem [shape: f32[32,1], index: 4, kind: input, shape index: {}]
  %s5 = inlined_call_operand.vmem [shape: f32[32,32], index: 5, kind: input, shape index: {}]
  %s6 = inlined_call_operand.vmem [shape: f32[32,1], index: 6, kind: input, shape index: {}]
  %s7 = inlined_call_operand.vmem [shape: f32[32,1], index: 7, kind: input, shape index: {}]
  %s8 = inlined_call_operand.<no memory space> [shape: f32[1,1], index: 8, kind: input, shape index: {}]
  %s9 = inlined_call_operand.hbm [shape: f32[1,500], index: 9, kind: output, shape index: {}]
  %s10 = sld [smem:[#allocation0]]
  $region69: #{tpu_custom_call.1} parent=0
    _
  %s12 = ssub.s32 1, %s10
  %s13 = scalar_select 0, %s12, %s10
  %14 = sst [smem:[#allocation2]] %s8
  $region1: #{tpu_custom_call.1} parent=0
    #allocation3 [shape = 'u8[2048]{0}', space=vmem, size = 0x800, scoped, tag = 'output window, operand 0']
    #allocation4 [shape = 's32[2]{0}', space=sflag, size = 0x8, scoped, tag = 'scoped memory for tpu_custom_call.1']
    %15 = vsyncpa [#allocation4], 0
    %s16 = scalar_lea.sflag [#allocation4], 1
    %17 = vsyncpa %s16, 0
    loop: start=0, step=1, limit=4
    $region2: #{tpu_custom_call.1} parent=1 // loop_pre_header
      _
    $region3: #{tpu_custom_call.1} parent=1 // loop_header
      %s19 = sphi 0, %s23
      %p20 = scmp.ge.s32.totalorder %s19, 4
      %s29 = sphi 0, %s31
      %s32 = sphi 0, %s29
      %s33 = sphi 0, %s32
      %s49 = sphi 0, %s33
      %s53 = sphi 0, %s53
      %s55 = sphi 0, %s53
      %s56 = sphi 0, %s55
      %s70 = sphi 0, %s56
      %s74 = sphi 0, %s74
      %s76 = sphi 0, %s74
      %s77 = sphi 0, %s76
      %s91 = sphi 0, %s77
      %s95 = sphi 0, %s95
      %s97 = sphi 0, %s95
      %s98 = sphi 0, %s97
      %s112 = sphi 0, %s98
      %s116 = sphi 0, %s116
      %s118 = sphi 0, %s116
      %s119 = sphi 0, %s118
      %s133 = sphi 0, %s119
      %s137 = sphi 0, %s137
      %s139 = sphi 0, %s137
      %s140 = sphi 0, %s139
      %s154 = sphi 0, %s140
      %s158 = sphi 0, %s158
      %s160 = sphi 0, %s158
      %s161 = sphi 0, %s160
      %s175 = sphi 0, %s161
      %s179 = sphi 0, %s179
      %s181 = sphi 0, %s179
      %s182 = sphi 0, %s181
      %s196 = sphi 0, %s182
      %s200 = sphi 0, %s200
      %s202 = sphi 0, %s200
      %s203 = sphi 0, %s202
      %s217 = sphi 0, %s203
      %s223 = sphi 0, %s225
      %s226 = sphi 0, %s223
      %s227 = sphi 0, %s226
      %s243 = sphi 0, %s227
    $region4: #{tpu_custom_call.1} parent=1 // loop_header_branch
      %22 = sbr.rel (%p20) target = $region8
    $region5: #{tpu_custom_call.1} parent=1 // loop_body
      %s24 = ssub.s32 %s19, 1
      %s25 = ssub.s32 %s19, 2
      %s26 = sadd.s32 %s19, 1
      %s27 = ssub.s32 %s19, %s26
      %p28 = scmp.eq.s32.totalorder %s27, 0
      %s30 = sadd.s32 %s29, 1
      %s31 = scalar_select %p28, %s29, %s30
      %p34 = pneg %p28
      %p35 = scmp.eq.s32.totalorder %s19, 1
      %p36 = por %p34, %p35
      %p37 = scmp.ne.s32.totalorder %s29, %s32
      %p38 = scmp.eq.s32.totalorder %s19, 0
      %p39 = por %p37, %p38
      %p40 = scmp.ne.s32.totalorder %s29, %s32
      %p41 = scmp.eq.s32.totalorder %s24, 1
      %p42 = por %p40, %p41
      %p43 = scmp.ne.s32.totalorder %s32, %s33
      %p44 = scmp.eq.s32.totalorder %s24, 0
      %p45 = por %p43, %p44
      %p46 = scmp.ne.s32.totalorder %s32, %s33
      %p47 = scmp.eq.s32.totalorder %s25, 1
      %p48 = por %p46, %p47
      %p50 = scmp.ne.s32.totalorder %s33, %s49
      %p51 = scmp.eq.s32.totalorder %s25, 0
      %p52 = por %p50, %p51
      %s54 = sadd.s32 %s53, 1
      %p57 = scmp.eq.s32.totalorder %s19, 1
      %p58 = scmp.ne.s32.totalorder %s53, %s55
      %p59 = scmp.eq.s32.totalorder %s19, 0
      %p60 = por %p58, %p59
      %p61 = scmp.ne.s32.totalorder %s53, %s55
      %p62 = scmp.eq.s32.totalorder %s24, 1
      %p63 = por %p61, %p62
      %p64 = scmp.ne.s32.totalorder %s55, %s56
      %p65 = scmp.eq.s32.totalorder %s24, 0
      %p66 = por %p64, %p65
      %p67 = scmp.ne.s32.totalorder %s55, %s56
      %p68 = scmp.eq.s32.totalorder %s25, 1
      %p69 = por %p67, %p68
      %p71 = scmp.ne.s32.totalorder %s56, %s70
      %p72 = scmp.eq.s32.totalorder %s25, 0
      %p73 = por %p71, %p72
      %s75 = sadd.s32 %s74, 1
      %p78 = scmp.eq.s32.totalorder %s19, 1
      %p79 = scmp.ne.s32.totalorder %s74, %s76
      %p80 = scmp.eq.s32.totalorder %s19, 0
      %p81 = por %p79, %p80
      %p82 = scmp.ne.s32.totalorder %s74, %s76
      %p83 = scmp.eq.s32.totalorder %s24, 1
      %p84 = por %p82, %p83
      %p85 = scmp.ne.s32.totalorder %s76, %s77
      %p86 = scmp.eq.s32.totalorder %s24, 0
      %p87 = por %p85, %p86
      %p88 = scmp.ne.s32.totalorder %s76, %s77
      %p89 = scmp.eq.s32.totalorder %s25, 1
      %p90 = por %p88, %p89
      %p92 = scmp.ne.s32.totalorder %s77, %s91
      %p93 = scmp.eq.s32.totalorder %s25, 0
      %p94 = por %p92, %p93
      %s96 = sadd.s32 %s95, 1
      %p99 = scmp.eq.s32.totalorder %s19, 1
      %p100 = scmp.ne.s32.totalorder %s95, %s97
      %p101 = scmp.eq.s32.totalorder %s19, 0
      %p102 = por %p100, %p101
      %p103 = scmp.ne.s32.totalorder %s95, %s97
      %p104 = scmp.eq.s32.totalorder %s24, 1
      %p105 = por %p103, %p104
      %p106 = scmp.ne.s32.totalorder %s97, %s98
      %p107 = scmp.eq.s32.totalorder %s24, 0
      %p108 = por %p106, %p107
      %p109 = scmp.ne.s32.totalorder %s97, %s98
      %p110 = scmp.eq.s32.totalorder %s25, 1
      %p111 = por %p109, %p110
      %p113 = scmp.ne.s32.totalorder %s98, %s112
      %p114 = scmp.eq.s32.totalorder %s25, 0
      %p115 = por %p113, %p114
      %s117 = sadd.s32 %s116, 1
      %p120 = scmp.eq.s32.totalorder %s19, 1
      %p121 = scmp.ne.s32.totalorder %s116, %s118
      %p122 = scmp.eq.s32.totalorder %s19, 0
      %p123 = por %p121, %p122
      %p124 = scmp.ne.s32.totalorder %s116, %s118
      %p125 = scmp.eq.s32.totalorder %s24, 1
      %p126 = por %p124, %p125
      %p127 = scmp.ne.s32.totalorder %s118, %s119
      %p128 = scmp.eq.s32.totalorder %s24, 0
      %p129 = por %p127, %p128
      %p130 = scmp.ne.s32.totalorder %s118, %s119
      %p131 = scmp.eq.s32.totalorder %s25, 1
      %p132 = por %p130, %p131
      %p134 = scmp.ne.s32.totalorder %s119, %s133
      %p135 = scmp.eq.s32.totalorder %s25, 0
      %p136 = por %p134, %p135
      %s138 = sadd.s32 %s137, 1
      %p141 = scmp.eq.s32.totalorder %s19, 1
      %p142 = scmp.ne.s32.totalorder %s137, %s139
      %p143 = scmp.eq.s32.totalorder %s19, 0
      %p144 = por %p142, %p143
      %p145 = scmp.ne.s32.totalorder %s137, %s139
      %p146 = scmp.eq.s32.totalorder %s24, 1
      %p147 = por %p145, %p146
      %p148 = scmp.ne.s32.totalorder %s139, %s140
      %p149 = scmp.eq.s32.totalorder %s24, 0
      %p150 = por %p148, %p149
      %p151 = scmp.ne.s32.totalorder %s139, %s140
      %p152 = scmp.eq.s32.totalorder %s25, 1
      %p153 = por %p151, %p152
      %p155 = scmp.ne.s32.totalorder %s140, %s154
      %p156 = scmp.eq.s32.totalorder %s25, 0
      %p157 = por %p155, %p156
      %s159 = sadd.s32 %s158, 1
      %p162 = scmp.eq.s32.totalorder %s19, 1
      %p163 = scmp.ne.s32.totalorder %s158, %s160
      %p164 = scmp.eq.s32.totalorder %s19, 0
      %p165 = por %p163, %p164
      %p166 = scmp.ne.s32.totalorder %s158, %s160
      %p167 = scmp.eq.s32.totalorder %s24, 1
      %p168 = por %p166, %p167
      %p169 = scmp.ne.s32.totalorder %s160, %s161
      %p170 = scmp.eq.s32.totalorder %s24, 0
      %p171 = por %p169, %p170
      %p172 = scmp.ne.s32.totalorder %s160, %s161
      %p173 = scmp.eq.s32.totalorder %s25, 1
      %p174 = por %p172, %p173
      %p176 = scmp.ne.s32.totalorder %s161, %s175
      %p177 = scmp.eq.s32.totalorder %s25, 0
      %p178 = por %p176, %p177
      %s180 = sadd.s32 %s179, 1
      %p183 = scmp.eq.s32.totalorder %s19, 1
      %p184 = scmp.ne.s32.totalorder %s179, %s181
      %p185 = scmp.eq.s32.totalorder %s19, 0
      %p186 = por %p184, %p185
      %p187 = scmp.ne.s32.totalorder %s179, %s181
      %p188 = scmp.eq.s32.totalorder %s24, 1
      %p189 = por %p187, %p188
      %p190 = scmp.ne.s32.totalorder %s181, %s182
      %p191 = scmp.eq.s32.totalorder %s24, 0
      %p192 = por %p190, %p191
      %p193 = scmp.ne.s32.totalorder %s181, %s182
      %p194 = scmp.eq.s32.totalorder %s25, 1
      %p195 = por %p193, %p194
      %p197 = scmp.ne.s32.totalorder %s182, %s196
      %p198 = scmp.eq.s32.totalorder %s25, 0
      %p199 = por %p197, %p198
      %s201 = sadd.s32 %s200, 1
      %p204 = scmp.eq.s32.totalorder %s19, 1
      %p205 = scmp.ne.s32.totalorder %s200, %s202
      %p206 = scmp.eq.s32.totalorder %s19, 0
      %p207 = por %p205, %p206
      %p208 = scmp.ne.s32.totalorder %s200, %s202
      %p209 = scmp.eq.s32.totalorder %s24, 1
      %p210 = por %p208, %p209
      %p211 = scmp.ne.s32.totalorder %s202, %s203
      %p212 = scmp.eq.s32.totalorder %s24, 0
      %p213 = por %p211, %p212
      %p214 = scmp.ne.s32.totalorder %s202, %s203
      %p215 = scmp.eq.s32.totalorder %s25, 1
      %p216 = por %p214, %p215
      %p218 = scmp.ne.s32.totalorder %s203, %s217
      %p219 = scmp.eq.s32.totalorder %s25, 0
      %p220 = por %p218, %p219
      %s221 = ssub.s32 %s19, %s26
      %p222 = scmp.eq.s32.totalorder %s221, 0
      %s224 = sadd.s32 %s223, 1
      %s225 = scalar_select %p222, %s223, %s224
      %p228 = pneg %p222
      %p229 = scmp.eq.s32.totalorder %s19, 1
      %p230 = por %p228, %p229
      %p231 = scmp.ne.s32.totalorder %s223, %s226
      %p232 = scmp.eq.s32.totalorder %s19, 0
      %p233 = por %p231, %p232
      %p234 = scmp.ne.s32.totalorder %s223, %s226
      %p235 = scmp.eq.s32.totalorder %s24, 1
      %p236 = por %p234, %p235
      %p237 = scmp.ne.s32.totalorder %s226, %s227
      %p238 = scmp.eq.s32.totalorder %s24, 0
      %p239 = por %p237, %p238
      %p240 = scmp.ne.s32.totalorder %s226, %s227
      %p241 = scmp.eq.s32.totalorder %s25, 1
      %p242 = por %p240, %p241
      %p244 = scmp.ne.s32.totalorder %s227, %s243
      %p245 = scmp.eq.s32.totalorder %s25, 0
      %p246 = por %p244, %p245
      %p247 = scmp.le.s32.totalorder 1, %s19
      %p248 = scmp.lt.s32.totalorder %s19, 3
      %p249 = pnand %p247, %p248
      %p250 = pneg %p249
      // Predicated region
      $region9: #{tpu_custom_call.1} parent=5 // pred_check
        _
      $region10: #{tpu_custom_call.1} parent=5 // pred_check_branch
        %252 = sbr.rel (%p249) target = $region12
      $region11: #{tpu_custom_call.1} parent=5 // pred_region
        %s253 = ssub.s32 %s19, 1
        // Predicated region
        $region13: #{tpu_custom_call.1} parent=11 // pred_check
          %p254 = pneg %p66
        $region14: #{tpu_custom_call.1} parent=11 // pred_check_branch
          %256 = sbr.rel (%p254) target = $region16
        $region15: #{tpu_custom_call.1} parent=11 // pred_region
          _
        $region16: #{tpu_custom_call.1} parent=11 // pred_fallthru
          _
        // Predicated region
        $region17: #{tpu_custom_call.1} parent=11 // pred_check
          %p257 = pneg %p87
        $region18: #{tpu_custom_call.1} parent=11 // pred_check_branch
          %259 = sbr.rel (%p257) target = $region20
        $region19: #{tpu_custom_call.1} parent=11 // pred_region
          _
        $region20: #{tpu_custom_call.1} parent=11 // pred_fallthru
          _
        // Predicated region
        $region21: #{tpu_custom_call.1} parent=11 // pred_check
          %p260 = pneg %p108
        $region22: #{tpu_custom_call.1} parent=11 // pred_check_branch
          %262 = sbr.rel (%p260) target = $region24
        $region23: #{tpu_custom_call.1} parent=11 // pred_region
          _
        $region24: #{tpu_custom_call.1} parent=11 // pred_fallthru
          _
        // Predicated region
        $region25: #{tpu_custom_call.1} parent=11 // pred_check
          %p263 = pneg %p129
        $region26: #{tpu_custom_call.1} parent=11 // pred_check_branch
          %265 = sbr.rel (%p263) target = $region28
        $region27: #{tpu_custom_call.1} parent=11 // pred_region
          _
        $region28: #{tpu_custom_call.1} parent=11 // pred_fallthru
          _
        // Predicated region
        $region29: #{tpu_custom_call.1} parent=11 // pred_check
          %p266 = pneg %p150
        $region30: #{tpu_custom_call.1} parent=11 // pred_check_branch
          %268 = sbr.rel (%p266) target = $region32
        $region31: #{tpu_custom_call.1} parent=11 // pred_region
          _
        $region32: #{tpu_custom_call.1} parent=11 // pred_fallthru
          _
        // Predicated region
        $region33: #{tpu_custom_call.1} parent=11 // pred_check
          %p269 = pneg %p171
        $region34: #{tpu_custom_call.1} parent=11 // pred_check_branch
          %271 = sbr.rel (%p269) target = $region36
        $region35: #{tpu_custom_call.1} parent=11 // pred_region
          _
        $region36: #{tpu_custom_call.1} parent=11 // pred_fallthru
          _
        // Predicated region
        $region37: #{tpu_custom_call.1} parent=11 // pred_check
          %p272 = pneg %p192
        $region38: #{tpu_custom_call.1} parent=11 // pred_check_branch
          %274 = sbr.rel (%p272) target = $region40
        $region39: #{tpu_custom_call.1} parent=11 // pred_region
          _
        $region40: #{tpu_custom_call.1} parent=11 // pred_fallthru
          _
        // Predicated region
        $region41: #{tpu_custom_call.1} parent=11 // pred_check
          %p275 = pneg %p213
        $region42: #{tpu_custom_call.1} parent=11 // pred_check_branch
          %277 = sbr.rel (%p275) target = $region44
        $region43: #{tpu_custom_call.1} parent=11 // pred_region
          _
        $region44: #{tpu_custom_call.1} parent=11 // pred_fallthru
          _
      $region12: #{tpu_custom_call.1} parent=5 // pred_fallthru
        _
      %p278 = scmp.lt.s32.totalorder %s19, 2
      // Predicated region
      $region45: #{tpu_custom_call.1} parent=5 // pred_check
        %p279 = pneg %p278
      $region46: #{tpu_custom_call.1} parent=5 // pred_check_branch
        %281 = sbr.rel (%p279) target = $region48
      $region47: #{tpu_custom_call.1} parent=5 // pred_region
        // Predicated region
        $region49: #{tpu_custom_call.1} parent=47 // pred_check
          %p282 = pneg %p39
        $region50: #{tpu_custom_call.1} parent=47 // pred_check_branch
          %284 = sbr.rel (%p282) target = $region52
        $region51: #{tpu_custom_call.1} parent=47 // pred_region
          %s285 = smul.u32 2, %s19
          %p286 = scmp.lt.s32.totalorder %s285, 3
          %s287 = scalar_select %p286, %s285, 3
          %s288 = smul.addr %s287, 8
          %s289 = scalar_lea.vmem %s0, %s288
          %s290 = smul.u32 2, %s19
        $region52: #{tpu_custom_call.1} parent=47 // pred_fallthru
          _
      $region48: #{tpu_custom_call.1} parent=5 // pred_fallthru
        _
      %p291 = scmp.le.s32.totalorder 1, %s19
      %p292 = scmp.lt.s32.totalorder %s19, 3
      %p293 = pnand %p291, %p292
      %p294 = pneg %p293
      // Predicated region
      $region53: #{tpu_custom_call.1} parent=5 // pred_check
        _
      $region54: #{tpu_custom_call.1} parent=5 // pred_check_branch
        %296 = sbr.rel (%p293) target = $region56
      $region55: #{tpu_custom_call.1} parent=5 // pred_region
        %s297 = ssub.s32 %s19, 1
        %s298 = smul.u32 2, %s24
        %p299 = scmp.lt.s32.totalorder %s298, 3
        %s300 = scalar_select %p299, %s298, 3
        %s301 = smul.addr %s300, 8
        %s302 = scalar_lea.vmem %s0, %s301
        %p303 = pneg %p45
        %p304 = pneg %p42
        %p305 = pneg %p66
        %p306 = pneg %p63
        %p307 = pneg %p87
        %p308 = pneg %p84
        %p309 = pneg %p108
        %p310 = pneg %p105
        %p311 = pneg %p129
        %p312 = pneg %p126
        %p313 = pneg %p150
        %p314 = pneg %p147
        %p315 = pneg %p171
        %p316 = pneg %p168
        %p317 = pneg %p192
        %p318 = pneg %p189
        %p319 = pneg %p213
        %p320 = pneg %p210
        %p321 = pneg %p239
        %p322 = pneg %p236
        %s323 = sand.u32 %s226, 1
        %s324 = scalar_lea.sflag [#allocation4], %s323
        %s325 = sand.u32 %s226, 1
        %s326 = smul.addr %s325, 2
        %s327 = scalar_lea.vmem [#allocation3], %s326
        %s328 = smul.u32 2, %s24
        %p329 = scmp.lt.s32.totalorder %s328, 3
        %s330 = scalar_select %p329, %s328, 3
        %s331 = smul.addr %s330, 8
        %s332 = scalar_lea.vmem %s0, %s331
        %s333 = smul.u32 2, %s24
        %s334 = smul.u32 2, %s24
        %v335 = vld [vmem:[%s332] sm:$0xff]
        %v336 = vld [vmem:[%s332 + $0x8] sm:$0xff]
        %v337 = vld [vmem:[%s1] sm:$0xff]
        %v338 = vld [vmem:[%s1 + $0x8] sm:$0xff]
        %v339 = vld [vmem:[%s1 + $0x10] sm:$0xff]
        %v340 = vld [vmem:[%s1 + $0x18] sm:$0xff]
        %v341 = vld [vmem:[%s2] sm:$0xff]
        %v342 = vld [vmem:[%s2 + $0x8] sm:$0xff]
        %v343 = vld [vmem:[%s2 + $0x10] sm:$0xff]
        %v344 = vld [vmem:[%s2 + $0x18] sm:$0xff]
        %346 = vset.pattern.permute.xlu0 0
        %347 = vperm.xlu0 %346, %v341
        %v348 = vpop.permute.xlu0 %347
        %351 = vset.pattern.permute.xlu0 0
        %352 = vperm.xlu0 %351, %v342
        %v353 = vpop.permute.xlu0 %352
        %356 = vset.pattern.permute.xlu0 0
        %357 = vperm.xlu0 %356, %v343
        %v358 = vpop.permute.xlu0 %357
        %361 = vset.pattern.permute.xlu0 0
        %362 = vperm.xlu0 %361, %v344
        %v363 = vpop.permute.xlu0 %362
        %vm365 = vcmask 64512
        %v367 = vsel %vm365, %v337, 0
        %v370 = vsel %vm365, %v338, 0
        %v373 = vsel %vm365, %v339, 0
        %v376 = vsel %vm365, %v340, 0
        %378 = vmatprep.subr.mxu0 0.0
        %379 = vmatpush1.msra.mxu0 0.0
        %380 = vmatprep.subr.mxu0 0.0
        %381 = vmatpush1.msra.mxu0 0.0
        %382 = vmatprep.subr.mxu0 0.0
        %383 = vmatpush1.msra.mxu0 0.0
        %384 = vmatprep.subr.mxu0 0.0
        %385 = vmatpush1.msra.mxu0 0.0
        %386 = vmatprep.subr.mxu0 0.0
        %387 = vmatpush1.msra.mxu0 0.0
        %388 = vmatprep.subr.mxu0 0.0
        %389 = vmatpush1.msra.mxu0 0.0
        %390 = vmatprep.subr.mxu0 0.0
        %391 = vmatpush1.msra.mxu0 0.0
        %392 = vmatprep.subr.mxu0 0.0
        %393 = vmatpush1.msra.mxu0 0.0
        %394 = vmatprep.subr.mxu0 0.0
        %395 = vmatpush1.msra.mxu0 0.0
        %396 = vmatprep.subr.mxu0 0.0
        %397 = vmatpush1.msra.mxu0 0.0
        %398 = vmatprep.subr.mxu0 0.0
        %399 = vmatpush1.msra.mxu0 0.0
        %400 = vmatprep.subr.mxu0 0.0
        %401 = vmatpush1.msra.mxu0 0.0
        %402 = vmatprep.subr.mxu0 0.0
        %403 = vmatpush1.msra.mxu0 0.0
        %404 = vmatprep.subr.mxu0 0.0
        %405 = vmatpush1.msra.mxu0 0.0
        %406 = vmatprep.subr.mxu0 0.0
        %407 = vmatpush1.msra.mxu0 0.0
        %408 = vmatprep.subr.mxu0 %v336
        %409 = vmatpush1.msra.mxu0 %v335
        %410 = vmatprep.subr.mxu0 0.0
        %411 = vmatpush2.msra.mxu0 0.0
        %412 = vmatprep.subr.mxu0 0.0
        %413 = vmatpush2.msra.mxu0 0.0
        %414 = vmatprep.subr.mxu0 0.0
        %415 = vmatpush2.msra.mxu0 0.0
        %416 = vmatprep.subr.mxu0 0.0
        %417 = vmatpush2.msra.mxu0 0.0
        %418 = vmatprep.subr.mxu0 0.0
        %419 = vmatpush2.msra.mxu0 0.0
        %420 = vmatprep.subr.mxu0 0.0
        %421 = vmatpush2.msra.mxu0 0.0
        %422 = vmatprep.subr.mxu0 0.0
        %423 = vmatpush2.msra.mxu0 0.0
        %424 = vmatprep.subr.mxu0 0.0
        %425 = vmatpush2.msra.mxu0 0.0
        %426 = vmatprep.subr.mxu0 0.0
        %427 = vmatpush2.msra.mxu0 0.0
        %428 = vmatprep.subr.mxu0 0.0
        %429 = vmatpush2.msra.mxu0 0.0
        %430 = vmatprep.subr.mxu0 0.0
        %431 = vmatpush2.msra.mxu0 0.0
        %432 = vmatprep.subr.mxu0 0.0
        %433 = vmatpush2.msra.mxu0 0.0
        %434 = vmatprep.subr.mxu0 0.0
        %435 = vmatpush2.msra.mxu0 0.0
        %436 = vmatprep.subr.mxu0 0.0
        %437 = vmatpush2.msra.mxu0 0.0
        %438 = vmatprep.subr.mxu0 0.0
        %439 = vmatpush2.msra.mxu0 0.0
        %440 = vmatprep.subr.mxu0 0.0
        %441 = vmatpush2.msra.mxu0 0.0
        %442 = vmatprep.mubr.f32.mxu0 0.0
        %443 = vmatmul.mubr.f32.gmra.mxu0 %v367
        %v444 = vpop.f32.mrf.mxu0
        %v445 = vadd.f32 %v348, %v444
        %v446 = vpop.f32.mrf.mxu0
        %v447 = vadd.f32 %v348, %v446
        %448 = vmatprep.mubr.f32.mxu0 0.0
        %449 = vmatmul.mubr.f32.gmra.mxu0 %v370
        %v450 = vpop.f32.mrf.mxu0
        %v451 = vadd.f32 %v353, %v450
        %v452 = vpop.f32.mrf.mxu0
        %v453 = vadd.f32 %v353, %v452
        %454 = vmatprep.mubr.f32.mxu0 0.0
        %455 = vmatmul.mubr.f32.gmra.mxu0 %v373
        %v456 = vpop.f32.mrf.mxu0
        %v457 = vadd.f32 %v358, %v456
        %v458 = vpop.f32.mrf.mxu0
        %v459 = vadd.f32 %v358, %v458
        %460 = vmatprep.mubr.f32.mxu0 0.0
        %461 = vmatmul.mubr.f32.gmra.mxu0 %v376
        %v462 = vpop.f32.mrf.mxu0
        %v463 = vadd.f32 %v363, %v462
        %v464 = vpop.f32.mrf.mxu0
        %v465 = vadd.f32 %v363, %v464
        %466 = vdwg.mxu0
        %v467 = vmax.f32 %v445, 0.0
        %v468 = vmax.f32 %v447, 0.0
        %v469 = vmax.f32 %v451, 0.0
        %v470 = vmax.f32 %v453, 0.0
        %v471 = vmax.f32 %v457, 0.0
        %v472 = vmax.f32 %v459, 0.0
        %v473 = vmax.f32 %v463, 0.0
        %v474 = vmax.f32 %v465, 0.0
        %v475 = vld [vmem:[%s3] sm:$0xff]
        %v476 = vld [vmem:[%s3 + $0x8] sm:$0xff]
        %v477 = vld [vmem:[%s3 + $0x10] sm:$0xff]
        %v478 = vld [vmem:[%s3 + $0x18] sm:$0xff]
        %v479 = vld [vmem:[%s4] sm:$0xff]
        %v480 = vld [vmem:[%s4 + $0x8] sm:$0xff]
        %v481 = vld [vmem:[%s4 + $0x10] sm:$0xff]
        %v482 = vld [vmem:[%s4 + $0x18] sm:$0xff]
        %484 = vset.pattern.permute.xlu0 0
        %485 = vperm.xlu0 %484, %v479
        %v486 = vpop.permute.xlu0 %485
        %489 = vset.pattern.permute.xlu0 0
        %490 = vperm.xlu0 %489, %v480
        %v491 = vpop.permute.xlu0 %490
        %494 = vset.pattern.permute.xlu0 0
        %495 = vperm.xlu0 %494, %v481
        %v496 = vpop.permute.xlu0 %495
        %499 = vset.pattern.permute.xlu0 0
        %500 = vperm.xlu0 %499, %v482
        %v501 = vpop.permute.xlu0 %500
        %vm503 = vcmask 261120
        %v505 = vsel %vm503, %v475, 0
        %v508 = vsel %vm503, %v476, 0
        %v511 = vsel %vm503, %v477, 0
        %v514 = vsel %vm503, %v478, 0
        %516 = vmatprep.subr.mxu0 0.0
        %517 = vmatpush1.msra.mxu0 0.0
        %518 = vmatprep.subr.mxu0 0.0
        %519 = vmatpush1.msra.mxu0 0.0
        %520 = vmatprep.subr.mxu0 0.0
        %521 = vmatpush1.msra.mxu0 0.0
        %522 = vmatprep.subr.mxu0 0.0
        %523 = vmatpush1.msra.mxu0 0.0
        %524 = vmatprep.subr.mxu0 0.0
        %525 = vmatpush1.msra.mxu0 0.0
        %526 = vmatprep.subr.mxu0 0.0
        %527 = vmatpush1.msra.mxu0 0.0
        %528 = vmatprep.subr.mxu0 0.0
        %529 = vmatpush1.msra.mxu0 0.0
        %530 = vmatprep.subr.mxu0 0.0
        %531 = vmatpush1.msra.mxu0 0.0
        %532 = vmatprep.subr.mxu0 0.0
        %533 = vmatpush1.msra.mxu0 0.0
        %534 = vmatprep.subr.mxu0 0.0
        %535 = vmatpush1.msra.mxu0 0.0
        %536 = vmatprep.subr.mxu0 0.0
        %537 = vmatpush1.msra.mxu0 0.0
        %538 = vmatprep.subr.mxu0 0.0
        %539 = vmatpush1.msra.mxu0 0.0
        %540 = vmatprep.subr.mxu0 %v474
        %541 = vmatpush1.msra.mxu0 %v473
        %542 = vmatprep.subr.mxu0 %v472
        %543 = vmatpush1.msra.mxu0 %v471
        %544 = vmatprep.subr.mxu0 %v470
        %545 = vmatpush1.msra.mxu0 %v469
        %546 = vmatprep.subr.mxu0 %v468
        %547 = vmatpush1.msra.mxu0 %v467
        %548 = vmatprep.subr.mxu0 0.0
        %549 = vmatpush2.msra.mxu0 0.0
        %550 = vmatprep.subr.mxu0 0.0
        %551 = vmatpush2.msra.mxu0 0.0
        %552 = vmatprep.subr.mxu0 0.0
        %553 = vmatpush2.msra.mxu0 0.0
        %554 = vmatprep.subr.mxu0 0.0
        %555 = vmatpush2.msra.mxu0 0.0
        %556 = vmatprep.subr.mxu0 0.0
        %557 = vmatpush2.msra.mxu0 0.0
        %558 = vmatprep.subr.mxu0 0.0
        %559 = vmatpush2.msra.mxu0 0.0
        %560 = vmatprep.subr.mxu0 0.0
        %561 = vmatpush2.msra.mxu0 0.0
        %562 = vmatprep.subr.mxu0 0.0
        %563 = vmatpush2.msra.mxu0 0.0
        %564 = vmatprep.subr.mxu0 0.0
        %565 = vmatpush2.msra.mxu0 0.0
        %566 = vmatprep.subr.mxu0 0.0
        %567 = vmatpush2.msra.mxu0 0.0
        %568 = vmatprep.subr.mxu0 0.0
        %569 = vmatpush2.msra.mxu0 0.0
        %570 = vmatprep.subr.mxu0 0.0
        %571 = vmatpush2.msra.mxu0 0.0
        %572 = vmatprep.subr.mxu0 0.0
        %573 = vmatpush2.msra.mxu0 0.0
        %574 = vmatprep.subr.mxu0 0.0
        %575 = vmatpush2.msra.mxu0 0.0
        %576 = vmatprep.subr.mxu0 0.0
        %577 = vmatpush2.msra.mxu0 0.0
        %578 = vmatprep.subr.mxu0 0.0
        %579 = vmatpush2.msra.mxu0 0.0
        %580 = vmatprep.mubr.f32.mxu0 0.0
        %581 = vmatmul.mubr.f32.gmra.mxu0 %v505
        %v582 = vpop.f32.mrf.mxu0
        %v583 = vadd.f32 %v486, %v582
        %v584 = vpop.f32.mrf.mxu0
        %v585 = vadd.f32 %v486, %v584
        %586 = vmatprep.mubr.f32.mxu0 0.0
        %587 = vmatmul.mubr.f32.gmra.mxu0 %v508
        %v588 = vpop.f32.mrf.mxu0
        %v589 = vadd.f32 %v491, %v588
        %v590 = vpop.f32.mrf.mxu0
        %v591 = vadd.f32 %v491, %v590
        %592 = vmatprep.mubr.f32.mxu0 0.0
        %593 = vmatmul.mubr.f32.gmra.mxu0 %v511
        %v594 = vpop.f32.mrf.mxu0
        %v595 = vadd.f32 %v496, %v594
        %v596 = vpop.f32.mrf.mxu0
        %v597 = vadd.f32 %v496, %v596
        %598 = vmatprep.mubr.f32.mxu0 0.0
        %599 = vmatmul.mubr.f32.gmra.mxu0 %v514
        %v600 = vpop.f32.mrf.mxu0
        %v601 = vadd.f32 %v501, %v600
        %v602 = vpop.f32.mrf.mxu0
        %v603 = vadd.f32 %v501, %v602
        %604 = vdwg.mxu0
        %v605 = vmax.f32 %v583, 0.0
        %v606 = vmax.f32 %v585, 0.0
        %v607 = vmax.f32 %v589, 0.0
        %v608 = vmax.f32 %v591, 0.0
        %v609 = vmax.f32 %v595, 0.0
        %v610 = vmax.f32 %v597, 0.0
        %v611 = vmax.f32 %v601, 0.0
        %v612 = vmax.f32 %v603, 0.0
        %v613 = vld [vmem:[%s5] sm:$0xff]
        %v614 = vld [vmem:[%s5 + $0x8] sm:$0xff]
        %v615 = vld [vmem:[%s5 + $0x10] sm:$0xff]
        %v616 = vld [vmem:[%s5 + $0x18] sm:$0xff]
        %v617 = vld [vmem:[%s6] sm:$0xff]
        %v618 = vld [vmem:[%s6 + $0x8] sm:$0xff]
        %v619 = vld [vmem:[%s6 + $0x10] sm:$0xff]
        %v620 = vld [vmem:[%s6 + $0x18] sm:$0xff]
        %622 = vset.pattern.permute.xlu0 0
        %623 = vperm.xlu0 %622, %v617
        %v624 = vpop.permute.xlu0 %623
        %627 = vset.pattern.permute.xlu0 0
        %628 = vperm.xlu0 %627, %v618
        %v629 = vpop.permute.xlu0 %628
        %632 = vset.pattern.permute.xlu0 0
        %633 = vperm.xlu0 %632, %v619
        %v634 = vpop.permute.xlu0 %633
        %637 = vset.pattern.permute.xlu0 0
        %638 = vperm.xlu0 %637, %v620
        %v639 = vpop.permute.xlu0 %638
        %v642 = vsel %vm503, %v613, 0
        %v645 = vsel %vm503, %v614, 0
        %v648 = vsel %vm503, %v615, 0
        %v651 = vsel %vm503, %v616, 0
        %653 = vmatprep.subr.mxu0 0.0
        %654 = vmatpush1.msra.mxu0 0.0
        %655 = vmatprep.subr.mxu0 0.0
        %656 = vmatpush1.msra.mxu0 0.0
        %657 = vmatprep.subr.mxu0 0.0
        %658 = vmatpush1.msra.mxu0 0.0
        %659 = vmatprep.subr.mxu0 0.0
        %660 = vmatpush1.msra.mxu0 0.0
        %661 = vmatprep.subr.mxu0 0.0
        %662 = vmatpush1.msra.mxu0 0.0
        %663 = vmatprep.subr.mxu0 0.0
        %664 = vmatpush1.msra.mxu0 0.0
        %665 = vmatprep.subr.mxu0 0.0
        %666 = vmatpush1.msra.mxu0 0.0
        %667 = vmatprep.subr.mxu0 0.0
        %668 = vmatpush1.msra.mxu0 0.0
        %669 = vmatprep.subr.mxu0 0.0
        %670 = vmatpush1.msra.mxu0 0.0
        %671 = vmatprep.subr.mxu0 0.0
        %672 = vmatpush1.msra.mxu0 0.0
        %673 = vmatprep.subr.mxu0 0.0
        %674 = vmatpush1.msra.mxu0 0.0
        %675 = vmatprep.subr.mxu0 0.0
        %676 = vmatpush1.msra.mxu0 0.0
        %677 = vmatprep.subr.mxu0 %v612
        %678 = vmatpush1.msra.mxu0 %v611
        %679 = vmatprep.subr.mxu0 %v610
        %680 = vmatpush1.msra.mxu0 %v609
        %681 = vmatprep.subr.mxu0 %v608
        %682 = vmatpush1.msra.mxu0 %v607
        %683 = vmatprep.subr.mxu0 %v606
        %684 = vmatpush1.msra.mxu0 %v605
        %685 = vmatprep.subr.mxu0 0.0
        %686 = vmatpush2.msra.mxu0 0.0
        %687 = vmatprep.subr.mxu0 0.0
        %688 = vmatpush2.msra.mxu0 0.0
        %689 = vmatprep.subr.mxu0 0.0
        %690 = vmatpush2.msra.mxu0 0.0
        %691 = vmatprep.subr.mxu0 0.0
        %692 = vmatpush2.msra.mxu0 0.0
        %693 = vmatprep.subr.mxu0 0.0
        %694 = vmatpush2.msra.mxu0 0.0
        %695 = vmatprep.subr.mxu0 0.0
        %696 = vmatpush2.msra.mxu0 0.0
        %697 = vmatprep.subr.mxu0 0.0
        %698 = vmatpush2.msra.mxu0 0.0
        %699 = vmatprep.subr.mxu0 0.0
        %700 = vmatpush2.msra.mxu0 0.0
        %701 = vmatprep.subr.mxu0 0.0
        %702 = vmatpush2.msra.mxu0 0.0
        %703 = vmatprep.subr.mxu0 0.0
        %704 = vmatpush2.msra.mxu0 0.0
        %705 = vmatprep.subr.mxu0 0.0
        %706 = vmatpush2.msra.mxu0 0.0
        %707 = vmatprep.subr.mxu0 0.0
        %708 = vmatpush2.msra.mxu0 0.0
        %709 = vmatprep.subr.mxu0 0.0
        %710 = vmatpush2.msra.mxu0 0.0
        %711 = vmatprep.subr.mxu0 0.0
        %712 = vmatpush2.msra.mxu0 0.0
        %713 = vmatprep.subr.mxu0 0.0
        %714 = vmatpush2.msra.mxu0 0.0
        %715 = vmatprep.subr.mxu0 0.0
        %716 = vmatpush2.msra.mxu0 0.0
        %717 = vmatprep.mubr.f32.mxu0 0.0
        %718 = vmatmul.mubr.f32.gmra.mxu0 %v642
        %v719 = vpop.f32.mrf.mxu0
        %v720 = vadd.f32 %v624, %v719
        %v721 = vpop.f32.mrf.mxu0
        %v722 = vadd.f32 %v624, %v721
        %723 = vmatprep.mubr.f32.mxu0 0.0
        %724 = vmatmul.mubr.f32.gmra.mxu0 %v645
        %v725 = vpop.f32.mrf.mxu0
        %v726 = vadd.f32 %v629, %v725
        %v727 = vpop.f32.mrf.mxu0
        %v728 = vadd.f32 %v629, %v727
        %729 = vmatprep.mubr.f32.mxu0 0.0
        %730 = vmatmul.mubr.f32.gmra.mxu0 %v648
        %v731 = vpop.f32.mrf.mxu0
        %v732 = vadd.f32 %v634, %v731
        %v733 = vpop.f32.mrf.mxu0
        %v734 = vadd.f32 %v634, %v733
        %735 = vmatprep.mubr.f32.mxu0 0.0
        %736 = vmatmul.mubr.f32.gmra.mxu0 %v651
        %v737 = vpop.f32.mrf.mxu0
        %v738 = vadd.f32 %v639, %v737
        %v739 = vpop.f32.mrf.mxu0
        %v740 = vadd.f32 %v639, %v739
        %741 = vdwg.mxu0
        %v742 = vmax.f32 %v720, 0.0
        %v743 = vmax.f32 %v722, 0.0
        %v744 = vmax.f32 %v726, 0.0
        %v745 = vmax.f32 %v728, 0.0
        %v746 = vmax.f32 %v732, 0.0
        %v747 = vmax.f32 %v734, 0.0
        %v748 = vmax.f32 %v738, 0.0
        %v749 = vmax.f32 %v740, 0.0
        %v750 = vld [vmem:[%s7] sm:$0xff]
        %v751 = vld [vmem:[%s7 + $0x8] sm:$0xff]
        %v752 = vld [vmem:[%s7 + $0x10] sm:$0xff]
        %v753 = vld [vmem:[%s7 + $0x18] sm:$0xff]
        %755 = vset.pattern.permute.xlu0 0
        %756 = vperm.xlu0 %755, %v750
        %v757 = vpop.permute.xlu0 %756
        %760 = vset.pattern.permute.xlu0 0
        %761 = vperm.xlu0 %760, %v751
        %v762 = vpop.permute.xlu0 %761
        %765 = vset.pattern.permute.xlu0 0
        %766 = vperm.xlu0 %765, %v752
        %v767 = vpop.permute.xlu0 %766
        %770 = vset.pattern.permute.xlu0 0
        %771 = vperm.xlu0 %770, %v753
        %v772 = vpop.permute.xlu0 %771
        %v774 = vmul.f32 %v742, %v757
        %v775 = vmul.f32 %v743, %v757
        %v776 = vmul.f32 %v744, %v762
        %v777 = vmul.f32 %v745, %v762
        %v778 = vmul.f32 %v746, %v767
        %v779 = vmul.f32 %v747, %v767
        %v780 = vmul.f32 %v748, %v772
        %v781 = vmul.f32 %v749, %v772
        %v782 = vadd.f32 %v774, %v776
        %v783 = vadd.f32 %v782, %v778
        %v784 = vadd.f32 %v783, %v780
        %v785 = vrot.slane %v784, 4
        %v786 = vadd.f32 %v784, %v785
        %v787 = vrot.slane %v786, 2
        %v788 = vadd.f32 %v786, %v787
        %v789 = vrot.slane %v788, 1
        %v790 = vadd.f32 %v788, %v789
        %v791 = vadd.f32 %v775, %v777
        %v792 = vadd.f32 %v791, %v779
        %v793 = vadd.f32 %v792, %v781
        %v794 = vrot.slane %v793, 4
        %v795 = vadd.f32 %v793, %v794
        %v796 = vrot.slane %v795, 2
        %v797 = vadd.f32 %v795, %v796
        %v798 = vrot.slane %v797, 1
        %v799 = vadd.f32 %v797, %v798
        %s800 = sld [smem:[#allocation2]]
        %v801 = vstv %s800
        %v802 = vadd.f32 %v790, %v801
        %v803 = vadd.f32 %v799, %v801
        %v806 = vcombine.low %v802, %v803
        %v808 = vunpack.c.l.s4 1966171168
        %v809 = vunpack.c.0.s8 %v808
        %v810 = vlaneseq
        %v811 = vshrl.u32 %v810, 7
        %v812 = vsub.s32 %v809, %v811
        %v813 = vrot.slane %v806, %v812
        %v815 = vunpack.c.l.s4 1966171168
        %v816 = vunpack.c.0.s8 %v815
        %v817 = vlaneseq
        %v818 = vshrl.u32 %v817, 7
        %v819 = vsub.s32 %v816, %v818
        %v820 = vrot.slane %v813, %v819
        %v822 = vlaneseq
        %vm823 = vcmp.ge.s32.totalorder %v822, 0
        %vm824 = vcmp.lt.s32.totalorder %v822, 256
        %vm825 = vmand %vm823, %vm824
        %826 = vst.msk [vmem:[%s327] sm:$0x3] %vm825, %v820
        %s827 = sand.u32 %s226, 1
        %s828 = scalar_lea.sflag [#allocation4], %s827
        %s829 = sand.u32 %s226, 1
        %s830 = smul.addr %s829, 2
        %s831 = scalar_lea.vmem [#allocation3], %s830
        // Predicated region
        $region57: #{tpu_custom_call.1} parent=55 // pred_check
          %p832 = pneg %p236
        $region58: #{tpu_custom_call.1} parent=55 // pred_check_branch
          %834 = sbr.rel (%p832) target = $region60
        $region59: #{tpu_custom_call.1} parent=55 // pred_region
          %s835 = smul.u32 2, %s24
          %s837 = ssub.s32 32, 32
          %838 = vsyncadd %s828, %s837
          %s839 = smul.addr %s835, 16
          %s840 = scalar_lea.hbm %s9, %s839
          %s842 = sshll.u32 %s831, 4
          %s843 = int_to_ptr.vmem [resolvable:$true] %s842
          %845 = dma.vmem_to_hbm [thread:$0]  %s843, 32, %s840, %s828
        $region60: #{tpu_custom_call.1} parent=55 // pred_fallthru
          _
      $region56: #{tpu_custom_call.1} parent=5 // pred_fallthru
        _
      %p846 = scmp.le.s32.totalorder 2, %s19
      // Predicated region
      $region61: #{tpu_custom_call.1} parent=5 // pred_check
        %p847 = pneg %p846
      $region62: #{tpu_custom_call.1} parent=5 // pred_check_branch
        %849 = sbr.rel (%p847) target = $region64
      $region63: #{tpu_custom_call.1} parent=5 // pred_region
        %s850 = ssub.s32 %s19, 2
        // Predicated region
        $region65: #{tpu_custom_call.1} parent=63 // pred_check
          %p851 = pneg %p242
        $region66: #{tpu_custom_call.1} parent=63 // pred_check_branch
          %853 = sbr.rel (%p851) target = $region68
        $region67: #{tpu_custom_call.1} parent=63 // pred_region
          %s854 = sand.u32 %s227, 1
          %s855 = scalar_lea.sflag [#allocation4], %s854
          %s856 = sand.u32 %s227, 1
          %s857 = smul.addr %s856, 2
          %s858 = scalar_lea.vmem [#allocation3], %s857
          %859 = dma.done %s855, 32
        $region68: #{tpu_custom_call.1} parent=63 // pred_fallthru
          _
      $region64: #{tpu_custom_call.1} parent=5 // pred_fallthru
        _
    $region6: #{tpu_custom_call.1} parent=1 // loop_footer
      %s23 = sadd.s32 1, %s19
    $region7: #{tpu_custom_call.1} parent=1 // loop_footer_branch
      %18 = sbr.rel target = $region3
    $region8: #{tpu_custom_call.1} parent=1 // loop_exit
      _
    %860 = vsyncpa [#allocation4], 1
    %s861 = scalar_lea.sflag [#allocation4], 1
    %862 = vsyncpa %s861, 1

</llo_original>
